<compile_context>
chip_gen: v7x
topology: tpu7x:2x2x1
jax: 0.10.0
libtpu: 0.0.40
codegen_flags: <defaults>
</compile_context>

<pallas_src>
import functools

import jax
import jax.numpy as jnp
from jax.experimental import pallas as pl
from jax.experimental.pallas import tpu as pltpu


# ---------------------------------------------------------------------------
# Phase 1: channel pooling (tiled over HW) + channel-attention MLP on the MXU.
# ---------------------------------------------------------------------------
def _channel_att_kernel(hw_total, x_ref, w1t_ref, b1_ref, w2t_ref, b2_ref,
                        ca_ref, sum_sc, max_sc):
    """x_ref: (B, C, hw_tile) f32; ca_ref: (B, C) f32 output (channel attention)."""
    k = pl.program_id(0)
    x = x_ref[...]                                        # (B, C, hw_tile)

    @pl.when(k == 0)
    def _():
        sum_sc[...] = jnp.zeros_like(sum_sc)
        max_sc[...] = jnp.full_like(max_sc, -jnp.inf)

    # Running channel pools over the HW (lane) axis.
    sum_sc[...] = sum_sc[...] + jnp.sum(x, axis=2)        # (B, C)
    max_sc[...] = jnp.maximum(max_sc[...], jnp.max(x, axis=2))

    @pl.when(k == pl.num_programs(0) - 1)
    def _():
        avg_p = sum_sc[...] * (1.0 / hw_total)            # (B, C) AdaptiveAvgPool2d(1)
        max_p = max_sc[...]                               # (B, C) AdaptiveMaxPool2d(1)

        # Fuse avg & max branches into one (2B, C) operand -> single MXU pass
        # through the shared two-layer MLP (weights pre-transposed in wrapper).
        v = jnp.concatenate([avg_p, max_p], axis=0)       # (2B, C)
        h = jnp.dot(v, w1t_ref[...],
                    preferred_element_type=jnp.float32) + b1_ref[...]
        h = jnp.maximum(h, 0.0)                           # ReLU
        y = jnp.dot(h, w2t_ref[...],
                    preferred_element_type=jnp.float32) + b2_ref[...]

        B = ca_ref.shape[0]
        ca_ref[...] = jax.nn.sigmoid(y[:B, :] + y[B:, :])


# ---------------------------------------------------------------------------
# Phase 2: apply channel attention + spatial attention per HW tile.
# ---------------------------------------------------------------------------
def _apply_kernel(x_ref, ca_ref, ws_ref, out_ref):
    """x_ref/out_ref: (B, C, hw_tile); ca_ref: (B, C); ws_ref: (2,) in SMEM."""
    x = x_ref[...]                                        # (B, C, hw_tile)
    ca = ca_ref[...]                                      # (B, C)

    x1 = x * ca[:, :, None]                               # channel-attended tile
    avg_s = jnp.mean(x1, axis=1)                          # (B, hw_tile) mean over C
    max_s = jnp.max(x1, axis=1)                           # (B, hw_tile) max over C

    w_avg = ws_ref[0]                                     # scalar reads from SMEM
    w_max = ws_ref[1]
    sa = jax.nn.sigmoid(w_avg * avg_s + w_max * max_s)    # (B, hw_tile)

    out_ref[...] = x1 * sa[:, None, :]


# ---------------------------------------------------------------------------
# Wrapper
# ---------------------------------------------------------------------------
def _pick_hw_tile(B, C, HW, budget_bytes=8 * 1024 * 1024):
    """Largest lane-aligned (multiple of 128) divisor of HW whose double-buffered
    input+output tiles stay within a conservative VMEM budget (safe for v7x 64 MiB)."""
    for t in (2048, 1024, 512, 256, 128):
        if HW % t == 0 and B * C * t * 4 * 4 <= budget_bytes:
            return t
    if HW % 128 == 0:
        return 128
    return HW  # fall back to full spatial axis (block == full dim is always legal)


def cbam_forward(x, w1, b1, w2, b2, ws, hw_tile=None):
    """x: (B, C, H, W) NCHW float32. Returns (B, C, H, W)."""
    B, C, H, W = x.shape
    HW = H * W
    x2 = x.reshape(B, C, HW)

    if hw_tile is None:
        hw_tile = _pick_hw_tile(B, C, HW)
    assert HW % hw_tile == 0, "HW must be divisible by the chosen tile"
    n_tiles = HW // hw_tile

    # Pre-transpose the 1x1-conv (== linear) weights in the wrapper so the kernel
    # issues plain row-major MXU matmuls (no in-kernel XLU transpose).
    w1_t = w1.T
    w2_t = w2.T

    # ---- Phase 1: channel attention vector (B, C) --------------------------
    ca = pl.pallas_call(
        functools.partial(_channel_att_kernel, float(HW)),
        out_shape=jax.ShapeDtypeStruct((B, C), jnp.float32),
        grid=(n_tiles,),
        in_specs=[
            pl.BlockSpec((B, C, hw_tile), lambda k: (0, 0, k)),   # x tile
            pl.BlockSpec((C, C), lambda k: (0, 0)),               # w1.T
            pl.BlockSpec((1, C), lambda k: (0, 0)),               # b1
            pl.BlockSpec((C, C), lambda k: (0, 0)),               # w2.T
            pl.BlockSpec((1, C), lambda k: (0, 0)),               # b2
        ],
        out_specs=pl.BlockSpec((B, C), lambda k: (0, 0)),
        scratch_shapes=[
            pltpu.VMEM((B, C), jnp.float32),   # running sum for avg pool
            pltpu.VMEM((B, C), jnp.float32),   # running max pool
        ],
        compiler_params=pltpu.CompilerParams(
            dimension_semantics=("arbitrary",)),
        cost_estimate=pl.CostEstimate(
            flops=2 * 2 * (2 * B) * C * C + 2 * B * C * HW,
            transcendentals=B * C,
            bytes_accessed=B * C * HW * 4 + 2 * C * C * 4 + 3 * B * C * 4),
    )(x2, w1_t, b1, w2_t, b2)

    # ---- Phase 2: apply channel + spatial attention, tiled over HW ----------
    out = pl.pallas_call(
        _apply_kernel,
        out_shape=jax.ShapeDtypeStruct((B, C, HW), x.dtype),
        grid=(n_tiles,),
        in_specs=[
            pl.BlockSpec((B, C, hw_tile), lambda k: (0, 0, k)),   # x tile
            pl.BlockSpec((B, C), lambda k: (0, 0)),               # ca (resident)
            pl.BlockSpec(memory_space=pltpu.MemorySpace.SMEM),    # spatial conv w
        ],
        out_specs=pl.BlockSpec((B, C, hw_tile), lambda k: (0, 0, k)),
        compiler_params=pltpu.CompilerParams(
            dimension_semantics=("parallel",)),   # v7x: shard tiles across 2 TCs
        cost_estimate=pl.CostEstimate(
            flops=5 * B * C * HW,
            transcendentals=B * HW,
            bytes_accessed=2 * B * C * HW * 4 + B * C * 4),
    )(x2, ca, ws)

    return out.reshape(B, C, H, W)


# ---------------------------------------------------------------------------
# Pure-JAX reference mirroring the PyTorch forward (kernel_size = 1).
# ---------------------------------------------------------------------------
def cbam_reference(x, w1, b1, w2, b2, ws):
    avg_p = x.mean(axis=(2, 3))                      # (B, C)
    max_p = x.max(axis=(2, 3))                       # (B, C)

    def mlp(v):
        h = jnp.maximum(v @ w1.T + b1, 0.0)
        return h @ w2.T + b2

    ca = jax.nn.sigmoid(mlp(avg_p) + mlp(max_p))     # (B, C)
    x1 = x * ca[:, :, None, None]
    avg_s = x1.mean(axis=1, keepdims=True)           # (B, 1, H, W)
    max_s = x1.max(axis=1, keepdims=True)            # (B, 1, H, W)
    sa = jax.nn.sigmoid(ws[0] * avg_s + ws[1] * max_s)
    return x1 * sa


if __name__ == "__main__":
    B, C, H, W = 2, 4, 16, 16
    key = jax.random.PRNGKey(0)
    kx, k1, k2, k3, k4, k5 = jax.random.split(key, 6)

    x = jax.random.normal(kx, (B, C, H, W), dtype=jnp.float32)

    # ChannelAttention params: fc1/fc2 are Conv2d(C, C, 1, bias=True) -> (C, C) weights
    w1 = 0.3 * jax.random.normal(k1, (C, C), dtype=jnp.float32)
    b1 = 0.1 * jax.random.normal(k2, (1, C), dtype=jnp.float32)
    w2 = 0.3 * jax.random.normal(k3, (C, C), dtype=jnp.float32)
    b2 = 0.1 * jax.random.normal(k4, (1, C), dtype=jnp.float32)
    # SpatialAttention params: Conv2d(2, 1, kernel_size=1, bias=False) -> 2 scalars
    ws = 0.5 * jax.random.normal(k5, (2,), dtype=jnp.float32)

    # hw_tile=128 forces a 2-step reduction grid so the pool-accumulator path is
    # exercised even at this small demo shape.
    out = cbam_forward(x, w1, b1, w2, b2, ws, hw_tile=128)
    out = jax.block_until_ready(out)

    ref = cbam_reference(x, w1, b1, w2, b2, ws)
    assert out.shape == (B, C, H, W)
    assert jnp.allclose(out, ref, atol=1e-5, rtol=1e-5), "mismatch vs JAX reference"

    print("KERNEL_OK")
</pallas_src>

<mosaic_0001>
module attributes {stable_mosaic.version = 11 : i64} {
  func.func @_channel_att_kernel(%arg0: i32, %arg1: memref<2x4x128xf32, #tpu.memory_space<vmem>>, %arg2: memref<4x4xf32, #tpu.memory_space<vmem>>, %arg3: memref<1x4xf32, #tpu.memory_space<vmem>>, %arg4: memref<4x4xf32, #tpu.memory_space<vmem>>, %arg5: memref<1x4xf32, #tpu.memory_space<vmem>>, %arg6: memref<2x4xf32, #tpu.memory_space<vmem>>, %arg7: memref<2x4xf32, #tpu.memory_space<vmem>>, %arg8: memref<2x4xf32, #tpu.memory_space<vmem>>) attributes {dimension_semantics = [#tpu.dimension_semantics<arbitrary>], iteration_bounds = array<i64: 2>, scalar_prefetch = 0 : i64, scratch_operands = 2 : i64, tpu.core_type = #tpu.core_type<tc>, window_params = [{transform_indices = @transform_0, window_bounds = array<i64: 2, 4, 128>}, {pipeline_mode = #tpu.pipeline_mode<synchronous>, transform_indices = @transform_1, window_bounds = array<i64: 4, 4>}, {pipeline_mode = #tpu.pipeline_mode<synchronous>, transform_indices = @transform_2, window_bounds = array<i64: 1, 4>}, {pipeline_mode = #tpu.pipeline_mode<synchronous>, transform_indices = @transform_3, window_bounds = array<i64: 4, 4>}, {pipeline_mode = #tpu.pipeline_mode<synchronous>, transform_indices = @transform_4, window_bounds = array<i64: 1, 4>}, {pipeline_mode = #tpu.pipeline_mode<synchronous>, transform_indices = @transform_5, window_bounds = array<i64: 2, 4>}]} {
    %c0 = arith.constant 0 : index
    %c0_0 = arith.constant 0 : index
    %c0_1 = arith.constant 0 : index
    %0 = vector.load %arg1[%c0, %c0_0, %c0_1] : memref<2x4x128xf32, #tpu.memory_space<vmem>>, vector<2x4x128xf32>
    %c0_i32 = arith.constant 0 : i32
    %1 = arith.cmpi eq, %arg0, %c0_i32 : i32
    %2 = arith.extui %1 : i1 to i32
    %c0_i32_2 = arith.constant 0 : i32
    %3 = arith.cmpi ne, %2, %c0_i32_2 : i32
    scf.if %3 {
      %cst_13 = arith.constant 0.000000e+00 : f32
      %15 = vector.broadcast %cst_13 : f32 to vector<2x4xf32>
      %c0_14 = arith.constant 0 : index
      %c0_15 = arith.constant 0 : index
      %16 = vector.load %arg7[%c0_14, %c0_15] : memref<2x4xf32, #tpu.memory_space<vmem>>, vector<2x4xf32>
      tpu.vector_store %arg7[%c0_14, %c0_15], %15 {strides = array<i32>} : memref<2x4xf32, #tpu.memory_space<vmem>>, vector<2x4xf32>,
      %cst_16 = arith.constant 0xFF800000 : f32
      %17 = vector.broadcast %cst_16 : f32 to vector<2x4xf32>
      %c0_17 = arith.constant 0 : index
      %c0_18 = arith.constant 0 : index
      %18 = vector.load %arg8[%c0_17, %c0_18] : memref<2x4xf32, #tpu.memory_space<vmem>>, vector<2x4xf32>
      tpu.vector_store %arg8[%c0_17, %c0_18], %17 {strides = array<i32>} : memref<2x4xf32, #tpu.memory_space<vmem>>, vector<2x4xf32>,
    } else {
    }
    %c0_3 = arith.constant 0 : index
    %c0_4 = arith.constant 0 : index
    %4 = vector.load %arg7[%c0_3, %c0_4] : memref<2x4xf32, #tpu.memory_space<vmem>>, vector<2x4xf32>
    %cst = arith.constant dense<0.000000e+00> : vector<2x4xf32>
    %5 = vector.multi_reduction <add>, %0, %cst [2] : vector<2x4x128xf32> to vector<2x4xf32>
    %6 = arith.addf %4, %5 : vector<2x4xf32>
    %c0_5 = arith.constant 0 : index
    %c0_6 = arith.constant 0 : index
    %7 = vector.load %arg7[%c0_5, %c0_6] : memref<2x4xf32, #tpu.memory_space<vmem>>, vector<2x4xf32>
    tpu.vector_store %arg7[%c0_5, %c0_6], %6 {strides = array<i32>} : memref<2x4xf32, #tpu.memory_space<vmem>>, vector<2x4xf32>,
    %c0_7 = arith.constant 0 : index
    %c0_8 = arith.constant 0 : index
    %8 = vector.load %arg8[%c0_7, %c0_8] : memref<2x4xf32, #tpu.memory_space<vmem>>, vector<2x4xf32>
    %cst_9 = arith.constant dense<0xFF800000> : vector<2x4xf32>
    %9 = vector.multi_reduction <maximumf>, %0, %cst_9 [2] : vector<2x4x128xf32> to vector<2x4xf32>
    %10 = arith.maximumf %8, %9 : vector<2x4xf32>
    %c0_10 = arith.constant 0 : index
    %c0_11 = arith.constant 0 : index
    %11 = vector.load %arg8[%c0_10, %c0_11] : memref<2x4xf32, #tpu.memory_space<vmem>>, vector<2x4xf32>
    tpu.vector_store %arg8[%c0_10, %c0_11], %10 {strides = array<i32>} : memref<2x4xf32, #tpu.memory_space<vmem>>, vector<2x4xf32>,
    %c1_i32 = arith.constant 1 : i32
    %12 = arith.cmpi eq, %arg0, %c1_i32 : i32
    %13 = arith.extui %12 : i1 to i32
    %c0_i32_12 = arith.constant 0 : i32
    %14 = arith.cmpi ne, %13, %c0_i32_12 : i32
    scf.if %14 {
      %c0_13 = arith.constant 0 : index
      %c0_14 = arith.constant 0 : index
      %15 = vector.load %arg7[%c0_13, %c0_14] : memref<2x4xf32, #tpu.memory_space<vmem>>, vector<2x4xf32>
      %cst_15 = arith.constant 3.906250e-03 : f32
      %16 = vector.broadcast %cst_15 : f32 to vector<2x4xf32>
      %17 = arith.mulf %15, %16 : vector<2x4xf32>
      %c0_16 = arith.constant 0 : index
      %c0_17 = arith.constant 0 : index
      %18 = vector.load %arg8[%c0_16, %c0_17] : memref<2x4xf32, #tpu.memory_space<vmem>>, vector<2x4xf32>
      %19 = tpu.concatenate %17, %18 in 0 : vector<2x4xf32>, vector<2x4xf32> -> vector<4x4xf32>
      %c0_18 = arith.constant 0 : index
      %c0_19 = arith.constant 0 : index
      %20 = vector.load %arg2[%c0_18, %c0_19] : memref<4x4xf32, #tpu.memory_space<vmem>>, vector<4x4xf32>
      %cst_20 = arith.constant dense<0.000000e+00> : vector<4x4xf32>
      %21 = tpu.matmul %19, %20, %cst_20 {dimension_numbers = #tpu.dot_dimension_numbers<[1], [0], [0], [1], [0, 0, 1, 1], [], []>} : vector<4x4xf32>, vector<4x4xf32>, vector<4x4xf32> -> vector<4x4xf32>
      %c0_21 = arith.constant 0 : index
      %c0_22 = arith.constant 0 : index
      %22 = vector.load %arg3[%c0_21, %c0_22] : memref<1x4xf32, #tpu.memory_space<vmem>>, vector<1x4xf32>
      %23 = vector.broadcast %22 : vector<1x4xf32> to vector<4x4xf32>
      %24 = arith.addf %21, %23 : vector<4x4xf32>
      %cst_23 = arith.constant 0.000000e+00 : f32
      %25 = vector.broadcast %cst_23 : f32 to vector<4x4xf32>
      %26 = arith.maximumf %24, %25 : vector<4x4xf32>
      %c0_24 = arith.constant 0 : index
      %c0_25 = arith.constant 0 : index
      %27 = vector.load %arg4[%c0_24, %c0_25] : memref<4x4xf32, #tpu.memory_space<vmem>>, vector<4x4xf32>
      %cst_26 = arith.constant dense<0.000000e+00> : vector<4x4xf32>
      %28 = tpu.matmul %26, %27, %cst_26 {dimension_numbers = #tpu.dot_dimension_numbers<[1], [0], [0], [1], [0, 0, 1, 1], [], []>} : vector<4x4xf32>, vector<4x4xf32>, vector<4x4xf32> -> vector<4x4xf32>
      %c0_27 = arith.constant 0 : index
      %c0_28 = arith.constant 0 : index
      %29 = vector.load %arg5[%c0_27, %c0_28] : memref<1x4xf32, #tpu.memory_space<vmem>>, vector<1x4xf32>
      %30 = vector.broadcast %29 : vector<1x4xf32> to vector<4x4xf32>
      %31 = arith.addf %28, %30 : vector<4x4xf32>
      %32 = vector.extract_strided_slice %31 {offsets = [0, 0], sizes = [2, 4], strides = [1, 1]} : vector<4x4xf32> to vector<2x4xf32>
      %33 = vector.extract_strided_slice %31 {offsets = [2, 0], sizes = [2, 4], strides = [1, 1]} : vector<4x4xf32> to vector<2x4xf32>
      %34 = arith.addf %32, %33 : vector<2x4xf32>
      %35 = arith.negf %34 : vector<2x4xf32>
      %36 = math.exp %35 : vector<2x4xf32>
      %cst_29 = arith.constant 1.000000e+00 : f32
      %37 = vector.broadcast %cst_29 : f32 to vector<2x4xf32>
      %38 = arith.addf %37, %36 : vector<2x4xf32>
      %39 = arith.divf %37, %38 : vector<2x4xf32>
      %c0_30 = arith.constant 0 : index
      %c0_31 = arith.constant 0 : index
      %40 = vector.load %arg6[%c0_30, %c0_31] : memref<2x4xf32, #tpu.memory_space<vmem>>, vector<2x4xf32>
      tpu.vector_store %arg6[%c0_30, %c0_31], %39 {strides = array<i32>} : memref<2x4xf32, #tpu.memory_space<vmem>>, vector<2x4xf32>,
    } else {
    }
    return
  }
  func.func @transform_0(%arg0: i32) -> (i32, i32, i32) {
    %c0_i32 = arith.constant 0 : i32
    %c0_i32_0 = arith.constant 0 : i32
    %c0_i32_1 = arith.constant 0 : i32
    return %c0_i32, %c0_i32_0, %arg0 : i32, i32, i32
  }
  func.func @transform_1(%arg0: i32) -> (i32, i32) {
    %c0_i32 = arith.constant 0 : i32
    %c0_i32_0 = arith.constant 0 : i32
    %c0_i32_1 = arith.constant 0 : i32
    return %c0_i32, %c0_i32_0 : i32, i32
  }
  func.func @transform_2(%arg0: i32) -> (i32, i32) {
    %c0_i32 = arith.constant 0 : i32
    %c0_i32_0 = arith.constant 0 : i32
    %c0_i32_1 = arith.constant 0 : i32
    return %c0_i32, %c0_i32_0 : i32, i32
  }
  func.func @transform_3(%arg0: i32) -> (i32, i32) {
    %c0_i32 = arith.constant 0 : i32
    %c0_i32_0 = arith.constant 0 : i32
    %c0_i32_1 = arith.constant 0 : i32
    return %c0_i32, %c0_i32_0 : i32, i32
  }
  func.func @transform_4(%arg0: i32) -> (i32, i32) {
    %c0_i32 = arith.constant 0 : i32
    %c0_i32_0 = arith.constant 0 : i32
    %c0_i32_1 = arith.constant 0 : i32
    return %c0_i32, %c0_i32_0 : i32, i32
  }
  func.func @transform_5(%arg0: i32) -> (i32, i32) {
    %c0_i32 = arith.constant 0 : i32
    %c0_i32_0 = arith.constant 0 : i32
    %c0_i32_1 = arith.constant 0 : i32
    return %c0_i32, %c0_i32_0 : i32, i32
  }
}

</mosaic_0001>

<llo_original>
// kernel: tpu_custom_call.1
$region0: #{tpu_custom_call.1}
  #allocation0 [shape = 'u32[]', space=smem, size = 0x4, offset = 0x4, fixed_abs, tag = 'smem constant byte address 0x4 - core index']
  #allocation1 [shape = 'u32[144,128]{1,0:T(1,128)}', space=vmem, size = 0x12000, scoped, tag = 'internal scratch']
  #allocation2 [shape = 'f32[2,4]{1,0:T(2,128)}', space=vmem, size = 0x400, scoped, tag = 'scratch operand']
  #allocation3 [shape = 'f32[2,4]{1,0:T(2,128)}', space=vmem, size = 0x400, scoped, tag = 'scratch operand']
  %s0 = inlined_call_operand.hbm [shape: f32[2,4,256], index: 0, kind: input, shape index: {}]
  %s1 = inlined_call_operand.hbm [shape: f32[4,4], index: 1, kind: input, shape index: {}]
  %s2 = inlined_call_operand.vmem [shape: f32[1,4], index: 2, kind: input, shape index: {}]
  %s3 = inlined_call_operand.vmem [shape: f32[4,4], index: 3, kind: input, shape index: {}]
  %s4 = inlined_call_operand.vmem [shape: f32[1,4], index: 4, kind: input, shape index: {}]
  %s5 = inlined_call_operand.hbm [shape: f32[2,4], index: 5, kind: output, shape index: {}]
  %s6 = sld [smem:[#allocation0]]
  $region69: #{tpu_custom_call.1} parent=0
    _
  %s8 = ssub.s32 1, %s6
  %s9 = scalar_select 0, %s8, %s6
  $region1: #{tpu_custom_call.1} parent=0
    #allocation4 [shape = 'u8[8192]{0}', space=vmem, size = 0x2000, scoped, tag = 'input window, operand 0']
    #allocation5 [shape = 's32[2]{0}', space=sflag, size = 0x8, scoped, tag = 'scoped memory for tpu_custom_call.1']
    #allocation6 [shape = 's32[2]{0}', space=sflag, size = 0x8, scoped, tag = 'scoped memory for tpu_custom_call.1']
    #allocation7 [shape = 'u8[2048]{0}', space=vmem, size = 0x800, scoped, tag = 'input window, operand 1, single buffered']
    #allocation8 [shape = 's32[1]{0}', space=sflag, size = 0x4, scoped, tag = 'scoped memory for tpu_custom_call.1']
    #allocation9 [shape = 'u8[1024]{0}', space=vmem, size = 0x400, scoped, tag = 'output window, operand 0, single buffered']
    %10 = vsyncpa [#allocation5], 0
    %s11 = scalar_lea.sflag [#allocation5], 1
    %12 = vsyncpa %s11, 0
    %13 = vsyncpa [#allocation8], 0
    %14 = vsyncpa [#allocation6], 0
    loop: start=0, step=1, limit=4
    $region2: #{tpu_custom_call.1} parent=1 // loop_pre_header
      _
    $region3: #{tpu_custom_call.1} parent=1 // loop_header
      %s16 = sphi 0, %s20
      %p17 = scmp.ge.s32.totalorder %s16, 4
      %s26 = sphi 0, %s28
      %s29 = sphi 0, %s26
      %s30 = sphi 0, %s29
      %s46 = sphi 0, %s30
      %s50 = sphi 0, %s50
      %s52 = sphi 0, %s50
      %s53 = sphi 0, %s52
      %s67 = sphi 0, %s53
      %s71 = sphi 0, %s71
      %s73 = sphi 0, %s71
      %s74 = sphi 0, %s73
      %s88 = sphi 0, %s74
      %s92 = sphi 0, %s92
      %s94 = sphi 0, %s92
      %s95 = sphi 0, %s94
      %s109 = sphi 0, %s95
      %s113 = sphi 0, %s113
      %s115 = sphi 0, %s113
      %s116 = sphi 0, %s115
      %s130 = sphi 0, %s116
      %s134 = sphi 0, %s134
      %s136 = sphi 0, %s134
      %s137 = sphi 0, %s136
      %s151 = sphi 0, %s137
    $region4: #{tpu_custom_call.1} parent=1 // loop_header_branch
      %19 = sbr.rel (%p17) target = $region8
    $region5: #{tpu_custom_call.1} parent=1 // loop_body
      %s21 = ssub.s32 %s16, 1
      %s22 = ssub.s32 %s16, 2
      %s23 = sadd.s32 %s16, 1
      %s24 = ssub.s32 %s16, %s23
      %p25 = scmp.eq.s32.totalorder %s24, 0
      %s27 = sadd.s32 %s26, 1
      %s28 = scalar_select %p25, %s26, %s27
      %p31 = pneg %p25
      %p32 = scmp.eq.s32.totalorder %s16, 1
      %p33 = por %p31, %p32
      %p34 = scmp.ne.s32.totalorder %s26, %s29
      %p35 = scmp.eq.s32.totalorder %s16, 0
      %p36 = por %p34, %p35
      %p37 = scmp.ne.s32.totalorder %s26, %s29
      %p38 = scmp.eq.s32.totalorder %s21, 1
      %p39 = por %p37, %p38
      %p40 = scmp.ne.s32.totalorder %s29, %s30
      %p41 = scmp.eq.s32.totalorder %s21, 0
      %p42 = por %p40, %p41
      %p43 = scmp.ne.s32.totalorder %s29, %s30
      %p44 = scmp.eq.s32.totalorder %s22, 1
      %p45 = por %p43, %p44
      %p47 = scmp.ne.s32.totalorder %s30, %s46
      %p48 = scmp.eq.s32.totalorder %s22, 0
      %p49 = por %p47, %p48
      %s51 = sadd.s32 %s50, 1
      %p54 = scmp.eq.s32.totalorder %s16, 1
      %p55 = scmp.ne.s32.totalorder %s50, %s52
      %p56 = scmp.eq.s32.totalorder %s16, 0
      %p57 = por %p55, %p56
      %p58 = scmp.ne.s32.totalorder %s50, %s52
      %p59 = scmp.eq.s32.totalorder %s21, 1
      %p60 = por %p58, %p59
      %p61 = scmp.ne.s32.totalorder %s52, %s53
      %p62 = scmp.eq.s32.totalorder %s21, 0
      %p63 = por %p61, %p62
      %p64 = scmp.ne.s32.totalorder %s52, %s53
      %p65 = scmp.eq.s32.totalorder %s22, 1
      %p66 = por %p64, %p65
      %p68 = scmp.ne.s32.totalorder %s53, %s67
      %p69 = scmp.eq.s32.totalorder %s22, 0
      %p70 = por %p68, %p69
      %s72 = sadd.s32 %s71, 1
      %p75 = scmp.eq.s32.totalorder %s16, 1
      %p76 = scmp.ne.s32.totalorder %s71, %s73
      %p77 = scmp.eq.s32.totalorder %s16, 0
      %p78 = por %p76, %p77
      %p79 = scmp.ne.s32.totalorder %s71, %s73
      %p80 = scmp.eq.s32.totalorder %s21, 1
      %p81 = por %p79, %p80
      %p82 = scmp.ne.s32.totalorder %s73, %s74
      %p83 = scmp.eq.s32.totalorder %s21, 0
      %p84 = por %p82, %p83
      %p85 = scmp.ne.s32.totalorder %s73, %s74
      %p86 = scmp.eq.s32.totalorder %s22, 1
      %p87 = por %p85, %p86
      %p89 = scmp.ne.s32.totalorder %s74, %s88
      %p90 = scmp.eq.s32.totalorder %s22, 0
      %p91 = por %p89, %p90
      %s93 = sadd.s32 %s92, 1
      %p96 = scmp.eq.s32.totalorder %s16, 1
      %p97 = scmp.ne.s32.totalorder %s92, %s94
      %p98 = scmp.eq.s32.totalorder %s16, 0
      %p99 = por %p97, %p98
      %p100 = scmp.ne.s32.totalorder %s92, %s94
      %p101 = scmp.eq.s32.totalorder %s21, 1
      %p102 = por %p100, %p101
      %p103 = scmp.ne.s32.totalorder %s94, %s95
      %p104 = scmp.eq.s32.totalorder %s21, 0
      %p105 = por %p103, %p104
      %p106 = scmp.ne.s32.totalorder %s94, %s95
      %p107 = scmp.eq.s32.totalorder %s22, 1
      %p108 = por %p106, %p107
      %p110 = scmp.ne.s32.totalorder %s95, %s109
      %p111 = scmp.eq.s32.totalorder %s22, 0
      %p112 = por %p110, %p111
      %s114 = sadd.s32 %s113, 1
      %p117 = scmp.eq.s32.totalorder %s16, 1
      %p118 = scmp.ne.s32.totalorder %s113, %s115
      %p119 = scmp.eq.s32.totalorder %s16, 0
      %p120 = por %p118, %p119
      %p121 = scmp.ne.s32.totalorder %s113, %s115
      %p122 = scmp.eq.s32.totalorder %s21, 1
      %p123 = por %p121, %p122
      %p124 = scmp.ne.s32.totalorder %s115, %s116
      %p125 = scmp.eq.s32.totalorder %s21, 0
      %p126 = por %p124, %p125
      %p127 = scmp.ne.s32.totalorder %s115, %s116
      %p128 = scmp.eq.s32.totalorder %s22, 1
      %p129 = por %p127, %p128
      %p131 = scmp.ne.s32.totalorder %s116, %s130
      %p132 = scmp.eq.s32.totalorder %s22, 0
      %p133 = por %p131, %p132
      %s135 = sadd.s32 %s134, 1
      %p138 = scmp.eq.s32.totalorder %s16, 1
      %p139 = scmp.ne.s32.totalorder %s134, %s136
      %p140 = scmp.eq.s32.totalorder %s16, 0
      %p141 = por %p139, %p140
      %p142 = scmp.ne.s32.totalorder %s134, %s136
      %p143 = scmp.eq.s32.totalorder %s21, 1
      %p144 = por %p142, %p143
      %p145 = scmp.ne.s32.totalorder %s136, %s137
      %p146 = scmp.eq.s32.totalorder %s21, 0
      %p147 = por %p145, %p146
      %p148 = scmp.ne.s32.totalorder %s136, %s137
      %p149 = scmp.eq.s32.totalorder %s22, 1
      %p150 = por %p148, %p149
      %p152 = scmp.ne.s32.totalorder %s137, %s151
      %p153 = scmp.eq.s32.totalorder %s22, 0
      %p154 = por %p152, %p153
      %p155 = scmp.le.s32.totalorder 1, %s16
      %p156 = scmp.lt.s32.totalorder %s16, 3
      %p157 = pnand %p155, %p156
      %p158 = pneg %p157
      // Predicated region
      $region9: #{tpu_custom_call.1} parent=5 // pred_check
        _
      $region10: #{tpu_custom_call.1} parent=5 // pred_check_branch
        %160 = sbr.rel (%p157) target = $region12
      $region11: #{tpu_custom_call.1} parent=5 // pred_region
        %s161 = ssub.s32 %s16, 1
        // Predicated region
        $region13: #{tpu_custom_call.1} parent=11 // pred_check
          %p162 = pneg %p63
        $region14: #{tpu_custom_call.1} parent=11 // pred_check_branch
          %164 = sbr.rel (%p162) target = $region16
        $region15: #{tpu_custom_call.1} parent=11 // pred_region
          %s166 = ssub.s32 64, 64
          %167 = vsyncadd [#allocation8], %s166
          %s169 = sshll.u32 [#allocation7], 4
          %s170 = int_to_ptr.vmem [resolvable:$true] %s169
          %172 = dma.hbm_to_vmem [thread:$0]  %s1, 64, %s170, [#allocation8]
        $region16: #{tpu_custom_call.1} parent=11 // pred_fallthru
          _
        // Predicated region
        $region17: #{tpu_custom_call.1} parent=11 // pred_check
          %p173 = pneg %p84
        $region18: #{tpu_custom_call.1} parent=11 // pred_check_branch
          %175 = sbr.rel (%p173) target = $region20
        $region19: #{tpu_custom_call.1} parent=11 // pred_region
          _
        $region20: #{tpu_custom_call.1} parent=11 // pred_fallthru
          _
        // Predicated region
        $region21: #{tpu_custom_call.1} parent=11 // pred_check
          %p176 = pneg %p105
        $region22: #{tpu_custom_call.1} parent=11 // pred_check_branch
          %178 = sbr.rel (%p176) target = $region24
        $region23: #{tpu_custom_call.1} parent=11 // pred_region
          _
        $region24: #{tpu_custom_call.1} parent=11 // pred_fallthru
          _
        // Predicated region
        $region25: #{tpu_custom_call.1} parent=11 // pred_check
          %p179 = pneg %p126
        $region26: #{tpu_custom_call.1} parent=11 // pred_check_branch
          %181 = sbr.rel (%p179) target = $region28
        $region27: #{tpu_custom_call.1} parent=11 // pred_region
          _
        $region28: #{tpu_custom_call.1} parent=11 // pred_fallthru
          _
      $region12: #{tpu_custom_call.1} parent=5 // pred_fallthru
        _
      %p182 = scmp.lt.s32.totalorder %s16, 2
      // Predicated region
      $region29: #{tpu_custom_call.1} parent=5 // pred_check
        %p183 = pneg %p182
      $region30: #{tpu_custom_call.1} parent=5 // pred_check_branch
        %185 = sbr.rel (%p183) target = $region32
      $region31: #{tpu_custom_call.1} parent=5 // pred_region
        // Predicated region
        $region33: #{tpu_custom_call.1} parent=31 // pred_check
          %p186 = pneg %p36
        $region34: #{tpu_custom_call.1} parent=31 // pred_check_branch
          %188 = sbr.rel (%p186) target = $region36
        $region35: #{tpu_custom_call.1} parent=31 // pred_region
          %s189 = sand.u32 %s26, 1
          %s190 = scalar_lea.sflag [#allocation5], %s189
          %s191 = sand.u32 %s26, 1
          %s192 = smul.addr %s191, 8
          %s193 = scalar_lea.vmem [#allocation4], %s192
          %s195 = ssub.s32 128, 128
          %196 = vsyncadd %s190, %s195
          %s197 = smul.addr %s16, 64
          %s198 = scalar_lea.hbm %s0, %s197
          %s199 = sshll.u32 %s193, 4
          %s200 = int_to_ptr.vmem [resolvable:$true] %s199
          %205 = dma.hbm_to_vmem [thread:$0]  %s198, 128, %s200, %s190, 128, 64, 4
        $region36: #{tpu_custom_call.1} parent=31 // pred_fallthru
          _
      $region32: #{tpu_custom_call.1} parent=5 // pred_fallthru
        _
      %p206 = scmp.le.s32.totalorder 1, %s16
      %p207 = scmp.lt.s32.totalorder %s16, 3
      %p208 = pnand %p206, %p207
      %p209 = pneg %p208
      // Predicated region
      $region37: #{tpu_custom_call.1} parent=5 // pred_check
        _
      $region38: #{tpu_custom_call.1} parent=5 // pred_check_branch
        %211 = sbr.rel (%p208) target = $region40
      $region39: #{tpu_custom_call.1} parent=5 // pred_region
        %s212 = ssub.s32 %s16, 1
        %s213 = sand.u32 %s29, 1
        %s214 = scalar_lea.sflag [#allocation5], %s213
        %s215 = sand.u32 %s29, 1
        %s216 = smul.addr %s215, 8
        %s217 = scalar_lea.vmem [#allocation4], %s216
        // Predicated region
        $region41: #{tpu_custom_call.1} parent=39 // pred_check
          %p218 = pneg %p42
        $region42: #{tpu_custom_call.1} parent=39 // pred_check_branch
          %220 = sbr.rel (%p218) target = $region44
        $region43: #{tpu_custom_call.1} parent=39 // pred_region
          %221 = dma.done %s214, 128
        $region44: #{tpu_custom_call.1} parent=39 // pred_fallthru
          _
        // Predicated region
        $region45: #{tpu_custom_call.1} parent=39 // pred_check
          %p222 = pneg %p63
        $region46: #{tpu_custom_call.1} parent=39 // pred_check_branch
          %224 = sbr.rel (%p222) target = $region48
        $region47: #{tpu_custom_call.1} parent=39 // pred_region
          %225 = dma.done [#allocation8], 64
        $region48: #{tpu_custom_call.1} parent=39 // pred_fallthru
          _
        %s226 = sand.u32 %s29, 1
        %s227 = scalar_lea.sflag [#allocation5], %s226
        %s228 = sand.u32 %s29, 1
        %s229 = smul.addr %s228, 8
        %s230 = scalar_lea.vmem [#allocation4], %s229
        %p231 = pneg %p42
        %p232 = pneg %p39
        %p233 = pneg %p63
        %p234 = pneg %p60
        %p235 = pneg %p84
        %p236 = pneg %p81
        %p237 = pneg %p105
        %p238 = pneg %p102
        %p239 = pneg %p126
        %p240 = pneg %p123
        %p241 = pneg %p147
        %p242 = pneg %p144
        %v243 = vld [vmem:[%s217] sm:$0xf]
        %v244 = vld [vmem:[%s217 + $0x4] sm:$0xf]
        %p245 = scmp.eq.s32.totalorder %s21, 0
        // Predicated region
        $region49: #{tpu_custom_call.1} parent=39 // pred_check
          %p246 = pneg %p245
        $region50: #{tpu_custom_call.1} parent=39 // pred_check_branch
          %248 = sbr.rel (%p246) target = $region52
        $region51: #{tpu_custom_call.1} parent=39 // pred_region
          %vm249 = vcmask 25600
          %250 = vst.msk [vmem:[#allocation2] sm:$0x3] %vm249, 0.0
          %251 = vst.msk [vmem:[#allocation3] sm:$0x3] %vm249, -inf
        $region52: #{tpu_custom_call.1} parent=39 // pred_fallthru
          _
        %v252 = vld [vmem:[#allocation2] sm:$0x3]
        %vm253 = vcmask 1043456
        %v254 = vsel %vm253, %v243, 0.0
        %255 = vadd.xlane.f32.xlu0 %v254
        %v256 = vpop.xlane.xlu0 %255
        %v257 = vsel %vm253, %v244, 0.0
        %258 = vadd.xlane.f32.xlu0 %v257
        %v259 = vpop.xlane.xlu0 %258
        %v262 = vlaneseq
        %v263 = vand.u32 %v262, 127
        %v264 = vlaneseq
        %v265 = vshrl.u32 %v264, 7
        %v266 = vsub.s32 %v263, %v265
        %v267 = vrot.slane %v256, %v266
        %v268 = vlaneseq
        %v269 = vshrl.u32 %v268, 7
        %v270 = vsub.s32 %v263, %v269
        %v271 = vrot.slane %v259, %v270
        %vm272 = vcmask 1041409
        %v273 = vsel %vm272, %v271, %v267
        %v275 = vadd.f32 %v252, %v273
        %vm276 = vcmask 25600
        %277 = vst.msk [vmem:[#allocation2] sm:$0x3] %vm276, %v275
        %v278 = vld [vmem:[#allocation3] sm:$0x3]
        %v279 = vsel %vm253, %v243, -inf
        %280 = vmax.xlane.f32.xlu0 %v279
        %v281 = vpop.xlane.xlu0 %280
        %v282 = vsel %vm253, %v244, -inf
        %283 = vmax.xlane.f32.xlu0 %v282
        %v284 = vpop.xlane.xlu0 %283
        %v287 = vlaneseq
        %v288 = vshrl.u32 %v287, 7
        %v289 = vsub.s32 %v263, %v288
        %v290 = vrot.slane %v281, %v289
        %v291 = vlaneseq
        %v292 = vshrl.u32 %v291, 7
        %v293 = vsub.s32 %v263, %v292
        %v294 = vrot.slane %v284, %v293
        %v295 = vsel %vm272, %v294, %v290
        %v297 = vmax.f32 %v278, %v295
        %298 = vst.msk [vmem:[#allocation3] sm:$0x3] %vm276, %v297
        %p299 = scmp.eq.s32.totalorder %s21, 1
        // Predicated region
        $region53: #{tpu_custom_call.1} parent=39 // pred_check
          %p300 = pneg %p299
        $region54: #{tpu_custom_call.1} parent=39 // pred_check_branch
          %302 = sbr.rel (%p300) target = $region56
        $region55: #{tpu_custom_call.1} parent=39 // pred_region
          %v303 = vld [vmem:[#allocation2] sm:$0x3]
          %v304 = vmul.f32 %v303, 0.00390625
          %v305 = vld [vmem:[#allocation3] sm:$0x3]
          %v307 = vrot.slane %v305, 6
          %vm309 = vcmask 1041408
          %v310 = vsel %vm309, %v304, %v307
          %v311 = vld [vmem:[#allocation7] sm:$0xf]
          %v312 = vld [vmem:[%s2] sm:$0x1]
          %v314 = vlaneseq
          %v315 = vshrl.u32 %v314, 7
          %v316 = vsub.s32 0, %v315
          %v317 = vrot.slane %v312, %v316
          %vm319 = vcmask 31744
          %v321 = vsel %vm319, %v310, 0
          %v324 = vsel %vm253, %v311, 0
          %326 = vmatprep.subr.mxu0 0.0
          %327 = vmatpush1.msra.mxu0 %v324
          %328 = vmatprep.subr.mxu0 0.0
          %329 = vmatpush1.msra.mxu0 0.0
          %330 = vmatprep.subr.mxu0 0.0
          %331 = vmatpush1.msra.mxu0 0.0
          %332 = vmatprep.subr.mxu0 0.0
          %333 = vmatpush1.msra.mxu0 0.0
          %334 = vmatprep.subr.mxu0 0.0
          %335 = vmatpush1.msra.mxu0 0.0
          %336 = vmatprep.subr.mxu0 0.0
          %337 = vmatpush1.msra.mxu0 0.0
          %338 = vmatprep.subr.mxu0 0.0
          %339 = vmatpush1.msra.mxu0 0.0
          %340 = vmatprep.subr.mxu0 0.0
          %341 = vmatpush1.msra.mxu0 0.0
          %342 = vmatprep.subr.mxu0 0.0
          %343 = vmatpush1.msra.mxu0 0.0
          %344 = vmatprep.subr.mxu0 0.0
          %345 = vmatpush1.msra.mxu0 0.0
          %346 = vmatprep.subr.mxu0 0.0
          %347 = vmatpush1.msra.mxu0 0.0
          %348 = vmatprep.subr.mxu0 0.0
          %349 = vmatpush1.msra.mxu0 0.0
          %350 = vmatprep.subr.mxu0 0.0
          %351 = vmatpush1.msra.mxu0 0.0
          %352 = vmatprep.subr.mxu0 0.0
          %353 = vmatpush1.msra.mxu0 0.0
          %354 = vmatprep.subr.mxu0 0.0
          %355 = vmatpush1.msra.mxu0 0.0
          %356 = vmatprep.subr.mxu0 0.0
          %357 = vmatpush1.msra.mxu0 0.0
          %358 = vmatprep.subr.mxu0 0.0
          %359 = vmatpush1.msra.mxu0 0.0
          %360 = vmatprep.subr.mxu0 0.0
          %361 = vmatpush1.msra.mxu0 0.0
          %362 = vmatprep.subr.mxu0 0.0
          %363 = vmatpush1.msra.mxu0 0.0
          %364 = vmatprep.subr.mxu0 0.0
          %365 = vmatpush1.msra.mxu0 0.0
          %366 = vmatprep.subr.mxu0 0.0
          %367 = vmatpush1.msra.mxu0 0.0
          %368 = vmatprep.subr.mxu0 0.0
          %369 = vmatpush1.msra.mxu0 0.0
          %370 = vmatprep.subr.mxu0 0.0
          %371 = vmatpush1.msra.mxu0 0.0
          %372 = vmatprep.subr.mxu0 0.0
          %373 = vmatpush1.msra.mxu0 0.0
          %374 = vmatprep.subr.mxu0 0.0
          %375 = vmatpush1.msra.mxu0 0.0
          %376 = vmatprep.subr.mxu0 0.0
          %377 = vmatpush1.msra.mxu0 0.0
          %378 = vmatprep.subr.mxu0 0.0
          %379 = vmatpush1.msra.mxu0 0.0
          %380 = vmatprep.subr.mxu0 0.0
          %381 = vmatpush1.msra.mxu0 0.0
          %382 = vmatprep.subr.mxu0 0.0
          %383 = vmatpush1.msra.mxu0 0.0
          %384 = vmatprep.subr.mxu0 0.0
          %385 = vmatpush1.msra.mxu0 0.0
          %386 = vmatprep.subr.mxu0 0.0
          %387 = vmatpush1.msra.mxu0 0.0
          %388 = vmatprep.subr.mxu0 0.0
          %389 = vmatpush1.msra.mxu0 0.0
          %390 = vmatprep.mubr.f32.mxu0 0.0
          %391 = vmatmul.mubr.f32.gmra.mrb[0].mxu0 %v321
          %v392 = vpop.f32.mrb[0].mxu0
          %v393 = vadd.f32 %v317, %v392
          %v394 = vpop.f32.mrb[0].mxu0
          %395 = vdwg.mxu0
          %v396 = vmax.f32 %v393, 0.0
          %v397 = vld [vmem:[%s3] sm:$0xf]
          %v398 = vld [vmem:[%s4] sm:$0x1]
          %v400 = vlaneseq
          %v401 = vshrl.u32 %v400, 7
          %v402 = vsub.s32 0, %v401
          %v403 = vrot.slane %v398, %v402
          %v406 = vsel %vm319, %v396, 0
          %v409 = vsel %vm253, %v397, 0
          %411 = vmatprep.subr.mxu0 0.0
          %412 = vmatpush1.msra.mxu0 %v409
          %413 = vmatprep.subr.mxu0 0.0
          %414 = vmatpush1.msra.mxu0 0.0
          %415 = vmatprep.subr.mxu0 0.0
          %416 = vmatpush1.msra.mxu0 0.0
          %417 = vmatprep.subr.mxu0 0.0
          %418 = vmatpush1.msra.mxu0 0.0
          %419 = vmatprep.subr.mxu0 0.0
          %420 = vmatpush1.msra.mxu0 0.0
          %421 = vmatprep.subr.mxu0 0.0
          %422 = vmatpush1.msra.mxu0 0.0
          %423 = vmatprep.subr.mxu0 0.0
          %424 = vmatpush1.msra.mxu0 0.0
          %425 = vmatprep.subr.mxu0 0.0
          %426 = vmatpush1.msra.mxu0 0.0
          %427 = vmatprep.subr.mxu0 0.0
          %428 = vmatpush1.msra.mxu0 0.0
          %429 = vmatprep.subr.mxu0 0.0
          %430 = vmatpush1.msra.mxu0 0.0
          %431 = vmatprep.subr.mxu0 0.0
          %432 = vmatpush1.msra.mxu0 0.0
          %433 = vmatprep.subr.mxu0 0.0
          %434 = vmatpush1.msra.mxu0 0.0
          %435 = vmatprep.subr.mxu0 0.0
          %436 = vmatpush1.msra.mxu0 0.0
          %437 = vmatprep.subr.mxu0 0.0
          %438 = vmatpush1.msra.mxu0 0.0
          %439 = vmatprep.subr.mxu0 0.0
          %440 = vmatpush1.msra.mxu0 0.0
          %441 = vmatprep.subr.mxu0 0.0
          %442 = vmatpush1.msra.mxu0 0.0
          %443 = vmatprep.subr.mxu0 0.0
          %444 = vmatpush1.msra.mxu0 0.0
          %445 = vmatprep.subr.mxu0 0.0
          %446 = vmatpush1.msra.mxu0 0.0
          %447 = vmatprep.subr.mxu0 0.0
          %448 = vmatpush1.msra.mxu0 0.0
          %449 = vmatprep.subr.mxu0 0.0
          %450 = vmatpush1.msra.mxu0 0.0
          %451 = vmatprep.subr.mxu0 0.0
          %452 = vmatpush1.msra.mxu0 0.0
          %453 = vmatprep.subr.mxu0 0.0
          %454 = vmatpush1.msra.mxu0 0.0
          %455 = vmatprep.subr.mxu0 0.0
          %456 = vmatpush1.msra.mxu0 0.0
          %457 = vmatprep.subr.mxu0 0.0
          %458 = vmatpush1.msra.mxu0 0.0
          %459 = vmatprep.subr.mxu0 0.0
          %460 = vmatpush1.msra.mxu0 0.0
          %461 = vmatprep.subr.mxu0 0.0
          %462 = vmatpush1.msra.mxu0 0.0
          %463 = vmatprep.subr.mxu0 0.0
          %464 = vmatpush1.msra.mxu0 0.0
          %465 = vmatprep.subr.mxu0 0.0
          %466 = vmatpush1.msra.mxu0 0.0
          %467 = vmatprep.subr.mxu0 0.0
          %468 = vmatpush1.msra.mxu0 0.0
          %469 = vmatprep.subr.mxu0 0.0
          %470 = vmatpush1.msra.mxu0 0.0
          %471 = vmatprep.subr.mxu0 0.0
          %472 = vmatpush1.msra.mxu0 0.0
          %473 = vmatprep.subr.mxu0 0.0
          %474 = vmatpush1.msra.mxu0 0.0
          %475 = vmatprep.mubr.f32.mxu0 0.0
          %476 = vmatmul.mubr.f32.gmra.mrb[0].mxu0 %v406
          %v477 = vpop.f32.mrb[0].mxu0
          %v478 = vadd.f32 %v403, %v477
          %v479 = vpop.f32.mrb[0].mxu0
          %480 = vdwg.mxu0
          %v482 = vrot.slane %v478, 2
          %v484 = vadd.f32 %v478, %v482
          %v485 = vxor.u32 %v484, 2147483648
          %v486 = vmul.f32 %v485, 1.442695
          %v487 = vpow.pop %v486
          %v488 = vadd.f32 %v487, 1.0
          %v489 = vrcp.pop %v488
          %v490 = vmul.f32 1.0, %v489
          %491 = vst.msk [vmem:[#allocation9] sm:$0x3] %vm276, %v490
        $region56: #{tpu_custom_call.1} parent=39 // pred_fallthru
          _
        // Predicated region
        $region57: #{tpu_custom_call.1} parent=39 // pred_check
          %p492 = pneg %p144
        $region58: #{tpu_custom_call.1} parent=39 // pred_check_branch
          %494 = sbr.rel (%p492) target = $region60
        $region59: #{tpu_custom_call.1} parent=39 // pred_region
          %s496 = ssub.s32 32, 32
          %497 = vsyncadd [#allocation6], %s496
          %s499 = sshll.u32 [#allocation9], 4
          %s500 = int_to_ptr.vmem [resolvable:$true] %s499
          %502 = dma.vmem_to_hbm [thread:$0]  %s500, 32, %s5, [#allocation6]
        $region60: #{tpu_custom_call.1} parent=39 // pred_fallthru
          _
        // Predicated region
        $region61: #{tpu_custom_call.1} parent=39 // pred_check
          %p503 = pneg %p144
        $region62: #{tpu_custom_call.1} parent=39 // pred_check_branch
          %505 = sbr.rel (%p503) target = $region64
        $region63: #{tpu_custom_call.1} parent=39 // pred_region
          %506 = dma.done [#allocation6], 32
        $region64: #{tpu_custom_call.1} parent=39 // pred_fallthru
          _
      $region40: #{tpu_custom_call.1} parent=5 // pred_fallthru
        _
      %p507 = scmp.le.s32.totalorder 2, %s16
      // Predicated region
      $region65: #{tpu_custom_call.1} parent=5 // pred_check
        %p508 = pneg %p507
      $region66: #{tpu_custom_call.1} parent=5 // pred_check_branch
        %510 = sbr.rel (%p508) target = $region68
      $region67: #{tpu_custom_call.1} parent=5 // pred_region
        %s511 = ssub.s32 %s16, 2
      $region68: #{tpu_custom_call.1} parent=5 // pred_fallthru
        _
    $region6: #{tpu_custom_call.1} parent=1 // loop_footer
      %s20 = sadd.s32 1, %s16
    $region7: #{tpu_custom_call.1} parent=1 // loop_footer_branch
      %15 = sbr.rel target = $region3
    $region8: #{tpu_custom_call.1} parent=1 // loop_exit
      _
    %512 = vsyncpa [#allocation5], 1
    %s513 = scalar_lea.sflag [#allocation5], 1
    %514 = vsyncpa %s513, 1
    %515 = vsyncpa [#allocation8], 1
    %516 = vsyncpa [#allocation6], 1
    %s517 = scalar_lea.sflag [#allocation6], 1
    %518 = vsyncpa %s517, 1

</llo_original>
